<compile_context>
chip_gen: v7x
topology: tpu7x:2x2x1
jax: 0.10.0
libtpu: 0.0.40
codegen_flags: <defaults>
</compile_context>

<pallas_src>
from functools import partial

import jax
import jax.numpy as jnp
from jax.experimental import pallas as pl
from jax.experimental.pallas import tpu as pltpu


def _round_up(x, m):
    return ((x + m - 1) // m) * m


def _pick_tile(dim_padded, unit, cap):
    """Largest multiple of `unit` that divides `dim_padded` and is <= cap.

    `dim_padded` is already a multiple of `unit`, so the result always exists
    (worst case: `unit`). Choosing a divisor (instead of padding up to a fixed
    tile) avoids wasting FLOPs/HBM bytes on over-padded edge tiles.
    """
    n_units = dim_padded // unit
    cap_units = max(1, cap // unit)
    best = 1
    for t in range(1, min(n_units, cap_units) + 1):
        if n_units % t == 0:
            best = t
    return best * unit


def _maybe_split_for_megacore(td, tk, d_pad, k_pad, n_pad):
    """Guarantee >= 2 blocks across the parallel grid axes (v7x has 2 TCs).

    If the (d, k) parallel grid is (1, 1), halve whichever tile re-reads the
    smaller operand (splitting k re-reads S, splitting d re-reads M), keeping
    td a multiple of 16 and tk a multiple of 128. No-op if neither can split
    (tiny problems) or if there are already >= 2 parallel blocks.
    """
    if (d_pad // td) * (k_pad // tk) > 1:
        return td, tk
    s_reread = d_pad * n_pad  # extra bytes stream if we split along k
    m_reread = n_pad * k_pad  # extra bytes stream if we split along d
    can_split_k = (tk % 256) == 0
    can_split_d = (td % 32) == 0
    if can_split_k and (s_reread <= m_reread or not can_split_d):
        return td, tk // 2
    if can_split_d:
        return td // 2, tk
    return td, tk


def _sketch_matmul_kernel(s_ref, m_ref, o_ref):
    """One grid step of tilde{M} = S @ M.

    Grid = (d tiles, k tiles, N tiles). The contraction axis N is the last grid
    axis and is marked "arbitrary", so the (td, tk) float32 output block stays
    resident in VMEM across it; we zero it on the first N step and accumulate
    the bf16 x bf16 -> f32 MXU partial products straight into it.
    """
    @pl.when(pl.program_id(2) == 0)
    def _init():
        o_ref[...] = jnp.zeros_like(o_ref)

    o_ref[...] += jnp.dot(
        s_ref[...], m_ref[...], preferred_element_type=jnp.float32
    )


@partial(jax.jit, static_argnames=("d_out", "td_cap", "tk_cap", "tn_cap"))
def sketch_apply(S_padded, M, *, d_out, td_cap=512, tk_cap=1024, tn_cap=2048):
    """Compute tilde{M} = S @ M with a Pallas TPU kernel.

    S_padded: (d_pad, n_pad) bf16 sketch, pre-padded to multiples of (16, 128).
    M:        (N, k) matrix to be sketched (N <= n_pad; pad columns are zero
              in S so zero-padding M rows is exact).
    d_out:    number of valid sketch rows (static).
    returns:  (d_out, k) float32.
    """
    d_pad, n_pad = S_padded.shape
    N, k = M.shape
    assert N <= n_pad, "M has more rows than the sketch has columns"

    k_pad = _round_up(k, 128)
    # Cast/pad of M happens under jit every call (cheap, fuses); S is already
    # in its streaming form.
    M = M.astype(S_padded.dtype)
    if (n_pad, k_pad) != (N, k):
        M = jnp.pad(M, ((0, n_pad - N), (0, k_pad - k)))

    # Tiles: divisors of the (minimally padded) dims, as large as the caps
    # allow. td usually covers all of d -> M streamed exactly once.
    td = _pick_tile(d_pad, 16, td_cap)
    tk = _pick_tile(k_pad, 128, tk_cap)
    tn = _pick_tile(n_pad, 128, tn_cap)
    td, tk = _maybe_split_for_megacore(td, tk, d_pad, k_pad, n_pad)

    d_tiles = d_pad // td
    k_tiles = k_pad // tk
    n_tiles = n_pad // tn
    grid = (d_tiles, k_tiles, n_tiles)

    # Truthful traffic estimate: S is streamed once per k-tile, M once per
    # d-tile, the f32 output is written once.
    bytes_accessed = (k_tiles * d_pad * n_pad * 2
                      + d_tiles * n_pad * k_pad * 2
                      + d_pad * k_pad * 4)

    out = pl.pallas_call(
        _sketch_matmul_kernel,
        out_shape=jax.ShapeDtypeStruct((d_pad, k_pad), jnp.float32),
        grid_spec=pltpu.PrefetchScalarGridSpec(
            num_scalar_prefetch=0,
            grid=grid,
            in_specs=[
                # S tile: (td, tn) block at (row-tile i, contraction-tile n).
                pl.BlockSpec((td, tn), lambda i, j, n: (i, n)),
                # M tile: (tn, tk) block at (contraction-tile n, col-tile j).
                pl.BlockSpec((tn, tk), lambda i, j, n: (n, j)),
            ],
            # Output block resident across the (last) reduction axis.
            out_specs=pl.BlockSpec((td, tk), lambda i, j, n: (i, j)),
        ),
        compiler_params=pltpu.CompilerParams(
            dimension_semantics=("parallel", "parallel", "arbitrary"),
            # Max double-buffered footprint at the caps is ~16 MiB; 48 MiB
            # clears v5e's 16 MiB default scoped limit and stays well under
            # v7x's 64 MiB physical VMEM.
            vmem_limit_bytes=48 * 1024 * 1024,
        ),
        cost_estimate=pl.CostEstimate(
            flops=2 * d_pad * n_pad * k_pad,
            bytes_accessed=bytes_accessed,
            transcendentals=0,
        ),
    )(S_padded, M)

    return out[:d_out, :k]


class SketchOperatorPallas:
    """d x N sketching operator; forward computes S @ M via the Pallas kernel."""

    def __init__(self, d, N, key):
        self.d = d
        self.N = N
        # Deterministic Gaussian sketch: S_ij ~ N(0, 1/d). Cast to bf16 and
        # pad to layout minimums ONCE here so each __call__ streams S directly
        # with no per-call cast/pad traffic.
        S = (jax.random.normal(key, (d, N), dtype=jnp.float32)
             / jnp.sqrt(jnp.float32(d)))
        d_pad = _round_up(d, 16)    # bf16 sublane packing
        n_pad = _round_up(N, 128)   # lane width
        if (d_pad, n_pad) != (d, N):
            S = jnp.pad(S, ((0, d_pad - d), (0, n_pad - N)))
        self.S_padded = S.astype(jnp.bfloat16)

    def __call__(self, M):
        return sketch_apply(self.S_padded, M, d_out=self.d)


if __name__ == "__main__":
    key = jax.random.PRNGKey(0)
    k_s, k_m = jax.random.split(key)

    # Small shapes; N=640 exercises the lane-padded contraction path and
    # d=16 / k=32 exercise the sublane/lane padding of the output.
    d, N, k = 16, 640, 32
    op = SketchOperatorPallas(d, N, k_s)
    M = jax.random.normal(k_m, (N, k), dtype=jnp.float32)

    out = jax.block_until_ready(op(M))
    assert out.shape == (d, k)

    # Reference: the exact bf16 operands the kernel streams, f32 accumulation.
    S_eff = op.S_padded[:d, :N].astype(jnp.float32)
    M_bf = M.astype(jnp.bfloat16).astype(jnp.float32)
    ref = S_eff @ M_bf
    assert jnp.allclose(out, ref, atol=2e-3, rtol=2e-3)

    # Also exercise the multi-step reduction (accumulate-into-resident-output)
    # and multi-tile parallel axes by forcing small tile caps.
    out2 = jax.block_until_ready(
        sketch_apply(op.S_padded, M, d_out=d, td_cap=16, tk_cap=128, tn_cap=128)
    )
    assert out2.shape == (d, k)
    assert jnp.allclose(out2, ref, atol=2e-3, rtol=2e-3)

    print("KERNEL_OK")
</pallas_src>

<mosaic_0001>
module attributes {stable_mosaic.version = 11 : i64} {
  func.func @_sketch_matmul_kernel(%arg0: i32, %arg1: i32, %arg2: i32, %arg3: memref<16x640xbf16, #tpu.memory_space<vmem>>, %arg4: memref<640x128xbf16, #tpu.memory_space<vmem>>, %arg5: memref<16x128xf32, #tpu.memory_space<vmem>>) attributes {dimension_semantics = [#tpu.dimension_semantics<parallel>, #tpu.dimension_semantics<parallel>, #tpu.dimension_semantics<arbitrary>], iteration_bounds = array<i64: 1, 1, 1>, scalar_prefetch = 0 : i64, scratch_operands = 0 : i64, tpu.core_type = #tpu.core_type<tc>, window_params = [{transform_indices = @transform_0, window_bounds = array<i64: 16, 640>}, {transform_indices = @transform_1, window_bounds = array<i64: 640, 128>}, {transform_indices = @transform_2, window_bounds = array<i64: 16, 128>}]} {
    %c0_i32 = arith.constant 0 : i32
    %0 = arith.cmpi eq, %arg2, %c0_i32 : i32
    %1 = arith.extui %0 : i1 to i32
    %c0_i32_0 = arith.constant 0 : i32
    %2 = arith.cmpi ne, %1, %c0_i32_0 : i32
    scf.if %2 {
      %cst_8 = arith.constant 0.000000e+00 : f32
      %9 = vector.broadcast %cst_8 : f32 to vector<16x128xf32>
      %c0_9 = arith.constant 0 : index
      %c0_10 = arith.constant 0 : index
      %10 = vector.load %arg5[%c0_9, %c0_10] : memref<16x128xf32, #tpu.memory_space<vmem>>, vector<16x128xf32>
      tpu.vector_store %arg5[%c0_9, %c0_10], %9 {strides = array<i32>} : memref<16x128xf32, #tpu.memory_space<vmem>>, vector<16x128xf32>,
    } else {
    }
    %c0 = arith.constant 0 : index
    %c0_1 = arith.constant 0 : index
    %3 = vector.load %arg5[%c0, %c0_1] : memref<16x128xf32, #tpu.memory_space<vmem>>, vector<16x128xf32>
    %c0_2 = arith.constant 0 : index
    %c0_3 = arith.constant 0 : index
    %4 = vector.load %arg3[%c0_2, %c0_3] : memref<16x640xbf16, #tpu.memory_space<vmem>>, vector<16x640xbf16>
    %c0_4 = arith.constant 0 : index
    %c0_5 = arith.constant 0 : index
    %5 = vector.load %arg4[%c0_4, %c0_5] : memref<640x128xbf16, #tpu.memory_space<vmem>>, vector<640x128xbf16>
    %cst = arith.constant dense<0.000000e+00> : vector<16x128xf32>
    %6 = tpu.matmul %4, %5, %cst {dimension_numbers = #tpu.dot_dimension_numbers<[1], [0], [0], [1], [0, 0, 1, 1], [], []>} : vector<16x640xbf16>, vector<640x128xbf16>, vector<16x128xf32> -> vector<16x128xf32>
    %7 = arith.addf %3, %6 : vector<16x128xf32>
    %c0_6 = arith.constant 0 : index
    %c0_7 = arith.constant 0 : index
    %8 = vector.load %arg5[%c0_6, %c0_7] : memref<16x128xf32, #tpu.memory_space<vmem>>, vector<16x128xf32>
    tpu.vector_store %arg5[%c0_6, %c0_7], %7 {strides = array<i32>} : memref<16x128xf32, #tpu.memory_space<vmem>>, vector<16x128xf32>,
    return
  }
  func.func @transform_0(%arg0: i32, %arg1: i32, %arg2: i32) -> (i32, i32) {
    %c0_i32 = arith.constant 0 : i32
    return %arg0, %arg2 : i32, i32
  }
  func.func @transform_1(%arg0: i32, %arg1: i32, %arg2: i32) -> (i32, i32) {
    %c0_i32 = arith.constant 0 : i32
    return %arg2, %arg1 : i32, i32
  }
  func.func @transform_2(%arg0: i32, %arg1: i32, %arg2: i32) -> (i32, i32) {
    %c0_i32 = arith.constant 0 : i32
    return %arg0, %arg1 : i32, i32
  }
}

</mosaic_0001>

<llo_original>
// kernel: sketch_apply.1
$region0: #{sketch_apply.1}
  #allocation0 [shape = 'u32[]', space=smem, size = 0x4, offset = 0x4, fixed_abs, tag = 'smem constant byte address 0x4 - core index']
  #allocation1 [shape = 'u32[144,128]{1,0:T(1,128)}', space=vmem, size = 0x12000, scoped, tag = 'internal scratch']
  %s0 = inlined_call_operand.vmem [shape: bf16[16,640], index: 0, kind: input, shape index: {}]
  %s1 = inlined_call_operand.vmem [shape: bf16[640,128], index: 1, kind: input, shape index: {}]
  %s2 = inlined_call_operand.hbm [shape: f32[16,128], index: 2, kind: output, shape index: {}]
  %s3 = sld [smem:[#allocation0]]
  $region22: #{sketch_apply.1} parent=0
    _
  %s5 = ssub.s32 1, %s3
  %s6 = scalar_select 0, %s5, %s3
  $region1: #{sketch_apply.1} parent=0
    #allocation2 [shape = 'u8[8192]{0}', space=vmem, size = 0x2000, scoped, tag = 'output window, operand 0, single buffered']
    #allocation3 [shape = 's32[1]{0}', space=sflag, size = 0x4, scoped, tag = 'scoped memory for sketch_apply.1']
    %7 = vsyncpa [#allocation3], 0
    // Predicated region
    $region2: #{sketch_apply.1} parent=1 // pred_check
      _
    $region3: #{sketch_apply.1} parent=1 // pred_check_branch
      %9 = sbr.rel (0) target = $region5
    $region4: #{sketch_apply.1} parent=1 // pred_region
      _
    $region5: #{sketch_apply.1} parent=1 // pred_fallthru
      _
    // Predicated region
    $region6: #{sketch_apply.1} parent=1 // pred_check
      _
    $region7: #{sketch_apply.1} parent=1 // pred_check_branch
      %11 = sbr.rel (0) target = $region9
    $region8: #{sketch_apply.1} parent=1 // pred_region
      _
    $region9: #{sketch_apply.1} parent=1 // pred_fallthru
      _
    %p13 = scmp.eq.s32.totalorder 0, 0
    // Predicated region
    $region10: #{sketch_apply.1} parent=1 // pred_check
      %p14 = pneg %p13
    $region11: #{sketch_apply.1} parent=1 // pred_check_branch
      %16 = sbr.rel (%p14) target = $region13
    $region12: #{sketch_apply.1} parent=1 // pred_region
      %17 = vst [vmem:[#allocation2] sm:$0xff] 0.0
      %18 = vst [vmem:[#allocation2 + $0x8] sm:$0xff] 0.0
    $region13: #{sketch_apply.1} parent=1 // pred_fallthru
      _
    %v19 = vld [vmem:[#allocation2] sm:$0xff]
    %v20 = vld [vmem:[#allocation2 + $0x8] sm:$0xff]
    %v21 = vld [vmem:[%s0] sm:$0xff]
    %v22 = vld [vmem:[%s0 + $0x8] sm:$0xff]
    %v23 = vld [vmem:[%s0 + $0x10] sm:$0xf]
    %v24 = vld [vmem:[%s0 + $0x14] sm:$0xff]
    %v25 = vld [vmem:[%s0 + $0x1c] sm:$0xff]
    %v26 = vld [vmem:[%s0 + $0x24] sm:$0xf]
    %v27 = vld [vmem:[%s1] sm:$0xf]
    %v28 = vld [vmem:[%s1 + $0x4] sm:$0xf]
    %v29 = vld [vmem:[%s1 + $0x8] sm:$0xf]
    %v30 = vld [vmem:[%s1 + $0xc] sm:$0xf]
    %v31 = vld [vmem:[%s1 + $0x10] sm:$0xf]
    %v32 = vld [vmem:[%s1 + $0x14] sm:$0xf]
    %v33 = vld [vmem:[%s1 + $0x18] sm:$0xf]
    %v34 = vld [vmem:[%s1 + $0x1c] sm:$0xf]
    %v35 = vld [vmem:[%s1 + $0x20] sm:$0xf]
    %v36 = vld [vmem:[%s1 + $0x24] sm:$0xf]
    %v37 = vld [vmem:[%s1 + $0x28] sm:$0xf]
    %v38 = vld [vmem:[%s1 + $0x2c] sm:$0xf]
    %v39 = vld [vmem:[%s1 + $0x30] sm:$0xf]
    %v40 = vld [vmem:[%s1 + $0x34] sm:$0xf]
    %v41 = vld [vmem:[%s1 + $0x38] sm:$0xf]
    %v42 = vld [vmem:[%s1 + $0x3c] sm:$0xf]
    %v43 = vld [vmem:[%s1 + $0x40] sm:$0xf]
    %v44 = vld [vmem:[%s1 + $0x44] sm:$0xf]
    %v45 = vld [vmem:[%s1 + $0x48] sm:$0xf]
    %v46 = vld [vmem:[%s1 + $0x4c] sm:$0xf]
    %v47 = vld [vmem:[%s1 + $0x50] sm:$0xf]
    %v48 = vld [vmem:[%s1 + $0x54] sm:$0xf]
    %v49 = vld [vmem:[%s1 + $0x58] sm:$0xf]
    %v50 = vld [vmem:[%s1 + $0x5c] sm:$0xf]
    %v51 = vld [vmem:[%s1 + $0x60] sm:$0xf]
    %v52 = vld [vmem:[%s1 + $0x64] sm:$0xf]
    %v53 = vld [vmem:[%s1 + $0x68] sm:$0xf]
    %v54 = vld [vmem:[%s1 + $0x6c] sm:$0xf]
    %v55 = vld [vmem:[%s1 + $0x70] sm:$0xf]
    %v56 = vld [vmem:[%s1 + $0x74] sm:$0xf]
    %v57 = vld [vmem:[%s1 + $0x78] sm:$0xf]
    %v58 = vld [vmem:[%s1 + $0x7c] sm:$0xf]
    %v59 = vld [vmem:[%s1 + $0x80] sm:$0xf]
    %v60 = vld [vmem:[%s1 + $0x84] sm:$0xf]
    %v61 = vld [vmem:[%s1 + $0x88] sm:$0xf]
    %v62 = vld [vmem:[%s1 + $0x8c] sm:$0xf]
    %v63 = vld [vmem:[%s1 + $0x90] sm:$0xf]
    %v64 = vld [vmem:[%s1 + $0x94] sm:$0xf]
    %v65 = vld [vmem:[%s1 + $0x98] sm:$0xf]
    %v66 = vld [vmem:[%s1 + $0x9c] sm:$0xf]
    %v67 = vld [vmem:[%s1 + $0xa0] sm:$0xf]
    %v68 = vld [vmem:[%s1 + $0xa4] sm:$0xf]
    %v69 = vld [vmem:[%s1 + $0xa8] sm:$0xf]
    %v70 = vld [vmem:[%s1 + $0xac] sm:$0xf]
    %v71 = vld [vmem:[%s1 + $0xb0] sm:$0xf]
    %v72 = vld [vmem:[%s1 + $0xb4] sm:$0xf]
    %v73 = vld [vmem:[%s1 + $0xb8] sm:$0xf]
    %v74 = vld [vmem:[%s1 + $0xbc] sm:$0xf]
    %v75 = vld [vmem:[%s1 + $0xc0] sm:$0xf]
    %v76 = vld [vmem:[%s1 + $0xc4] sm:$0xf]
    %v77 = vld [vmem:[%s1 + $0xc8] sm:$0xf]
    %v78 = vld [vmem:[%s1 + $0xcc] sm:$0xf]
    %v79 = vld [vmem:[%s1 + $0xd0] sm:$0xf]
    %v80 = vld [vmem:[%s1 + $0xd4] sm:$0xf]
    %v81 = vld [vmem:[%s1 + $0xd8] sm:$0xf]
    %v82 = vld [vmem:[%s1 + $0xdc] sm:$0xf]
    %v83 = vld [vmem:[%s1 + $0xe0] sm:$0xf]
    %v84 = vld [vmem:[%s1 + $0xe4] sm:$0xf]
    %v85 = vld [vmem:[%s1 + $0xe8] sm:$0xf]
    %v86 = vld [vmem:[%s1 + $0xec] sm:$0xf]
    %v87 = vld [vmem:[%s1 + $0xf0] sm:$0xf]
    %v88 = vld [vmem:[%s1 + $0xf4] sm:$0xf]
    %v89 = vld [vmem:[%s1 + $0xf8] sm:$0xf]
    %v90 = vld [vmem:[%s1 + $0xfc] sm:$0xf]
    %v91 = vld [vmem:[%s1 + $0x100] sm:$0xf]
    %v92 = vld [vmem:[%s1 + $0x104] sm:$0xf]
    %v93 = vld [vmem:[%s1 + $0x108] sm:$0xf]
    %v94 = vld [vmem:[%s1 + $0x10c] sm:$0xf]
    %v95 = vld [vmem:[%s1 + $0x110] sm:$0xf]
    %v96 = vld [vmem:[%s1 + $0x114] sm:$0xf]
    %v97 = vld [vmem:[%s1 + $0x118] sm:$0xf]
    %v98 = vld [vmem:[%s1 + $0x11c] sm:$0xf]
    %v99 = vld [vmem:[%s1 + $0x120] sm:$0xf]
    %v100 = vld [vmem:[%s1 + $0x124] sm:$0xf]
    %v101 = vld [vmem:[%s1 + $0x128] sm:$0xf]
    %v102 = vld [vmem:[%s1 + $0x12c] sm:$0xf]
    %v103 = vld [vmem:[%s1 + $0x130] sm:$0xf]
    %v104 = vld [vmem:[%s1 + $0x134] sm:$0xf]
    %v105 = vld [vmem:[%s1 + $0x138] sm:$0xf]
    %v106 = vld [vmem:[%s1 + $0x13c] sm:$0xf]
    %v113 = vunpack.c.l.b16 %v21
    %v114 = vunpack.c.h.b16 %v21
    %v115 = vunpack.c.l.b16 %v22
    %v116 = vunpack.c.h.b16 %v22
    %v117 = vunpack.c.l.b16 %v23
    %v118 = vunpack.c.l.b16 %v24
    %v119 = vunpack.c.h.b16 %v24
    %v120 = vunpack.c.l.b16 %v25
    %v121 = vunpack.c.h.b16 %v25
    %v122 = vunpack.c.l.b16 %v26
    %v123 = vpack.c.b16 %v118, %v113
    %v124 = vpack.c.b16 %v119, %v114
    %v125 = vpack.c.b16 %v120, %v115
    %v126 = vpack.c.b16 %v121, %v116
    %v127 = vpack.c.b16 %v122, %v117
    %v213 = vunpack.c.l.b16 %v27
    %v214 = vunpack.c.l.b16 %v28
    %v215 = vunpack.c.l.b16 %v29
    %v216 = vunpack.c.l.b16 %v30
    %v217 = vunpack.c.l.b16 %v31
    %v218 = vunpack.c.l.b16 %v32
    %v219 = vunpack.c.l.b16 %v33
    %v220 = vunpack.c.l.b16 %v34
    %v221 = vunpack.c.l.b16 %v35
    %v222 = vunpack.c.l.b16 %v36
    %v223 = vunpack.c.l.b16 %v37
    %v224 = vunpack.c.l.b16 %v38
    %v225 = vunpack.c.l.b16 %v39
    %v226 = vunpack.c.l.b16 %v40
    %v227 = vunpack.c.l.b16 %v41
    %v228 = vunpack.c.l.b16 %v42
    %v229 = vunpack.c.l.b16 %v43
    %v230 = vunpack.c.l.b16 %v44
    %v231 = vunpack.c.l.b16 %v45
    %v232 = vunpack.c.l.b16 %v46
    %v233 = vunpack.c.l.b16 %v47
    %v234 = vunpack.c.l.b16 %v48
    %v235 = vunpack.c.l.b16 %v49
    %v236 = vunpack.c.l.b16 %v50
    %v237 = vunpack.c.l.b16 %v51
    %v238 = vunpack.c.l.b16 %v52
    %v239 = vunpack.c.l.b16 %v53
    %v240 = vunpack.c.l.b16 %v54
    %v241 = vunpack.c.l.b16 %v55
    %v242 = vunpack.c.l.b16 %v56
    %v243 = vunpack.c.l.b16 %v57
    %v244 = vunpack.c.l.b16 %v58
    %v245 = vunpack.c.l.b16 %v59
    %v246 = vunpack.c.l.b16 %v60
    %v247 = vunpack.c.l.b16 %v61
    %v248 = vunpack.c.l.b16 %v62
    %v249 = vunpack.c.l.b16 %v63
    %v250 = vunpack.c.l.b16 %v64
    %v251 = vunpack.c.l.b16 %v65
    %v252 = vunpack.c.l.b16 %v66
    %v253 = vunpack.c.l.b16 %v67
    %v254 = vunpack.c.l.b16 %v68
    %v255 = vunpack.c.l.b16 %v69
    %v256 = vunpack.c.l.b16 %v70
    %v257 = vunpack.c.l.b16 %v71
    %v258 = vunpack.c.l.b16 %v72
    %v259 = vunpack.c.l.b16 %v73
    %v260 = vunpack.c.l.b16 %v74
    %v261 = vunpack.c.l.b16 %v75
    %v262 = vunpack.c.l.b16 %v76
    %v263 = vunpack.c.l.b16 %v77
    %v264 = vunpack.c.l.b16 %v78
    %v265 = vunpack.c.l.b16 %v79
    %v266 = vunpack.c.l.b16 %v80
    %v267 = vunpack.c.l.b16 %v81
    %v268 = vunpack.c.l.b16 %v82
    %v269 = vunpack.c.l.b16 %v83
    %v270 = vunpack.c.l.b16 %v84
    %v271 = vunpack.c.l.b16 %v85
    %v272 = vunpack.c.l.b16 %v86
    %v273 = vunpack.c.l.b16 %v87
    %v274 = vunpack.c.l.b16 %v88
    %v275 = vunpack.c.l.b16 %v89
    %v276 = vunpack.c.l.b16 %v90
    %v277 = vunpack.c.l.b16 %v91
    %v278 = vunpack.c.l.b16 %v92
    %v279 = vunpack.c.l.b16 %v93
    %v280 = vunpack.c.l.b16 %v94
    %v281 = vunpack.c.l.b16 %v95
    %v282 = vunpack.c.l.b16 %v96
    %v283 = vunpack.c.l.b16 %v97
    %v284 = vunpack.c.l.b16 %v98
    %v285 = vunpack.c.l.b16 %v99
    %v286 = vunpack.c.l.b16 %v100
    %v287 = vunpack.c.l.b16 %v101
    %v288 = vunpack.c.l.b16 %v102
    %v289 = vunpack.c.l.b16 %v103
    %v290 = vunpack.c.l.b16 %v104
    %v291 = vunpack.c.l.b16 %v105
    %v292 = vunpack.c.l.b16 %v106
    %v293 = vpack.c.b16 %v214, %v213
    %v294 = vpack.c.b16 %v216, %v215
    %v295 = vpack.c.b16 %v218, %v217
    %v296 = vpack.c.b16 %v220, %v219
    %v297 = vpack.c.b16 %v222, %v221
    %v298 = vpack.c.b16 %v224, %v223
    %v299 = vpack.c.b16 %v226, %v225
    %v300 = vpack.c.b16 %v228, %v227
    %v301 = vpack.c.b16 %v230, %v229
    %v302 = vpack.c.b16 %v232, %v231
    %v303 = vpack.c.b16 %v234, %v233
    %v304 = vpack.c.b16 %v236, %v235
    %v305 = vpack.c.b16 %v238, %v237
    %v306 = vpack.c.b16 %v240, %v239
    %v307 = vpack.c.b16 %v242, %v241
    %v308 = vpack.c.b16 %v244, %v243
    %v309 = vpack.c.b16 %v246, %v245
    %v310 = vpack.c.b16 %v248, %v247
    %v311 = vpack.c.b16 %v250, %v249
    %v312 = vpack.c.b16 %v252, %v251
    %v313 = vpack.c.b16 %v254, %v253
    %v314 = vpack.c.b16 %v256, %v255
    %v315 = vpack.c.b16 %v258, %v257
    %v316 = vpack.c.b16 %v260, %v259
    %v317 = vpack.c.b16 %v262, %v261
    %v318 = vpack.c.b16 %v264, %v263
    %v319 = vpack.c.b16 %v266, %v265
    %v320 = vpack.c.b16 %v268, %v267
    %v321 = vpack.c.b16 %v270, %v269
    %v322 = vpack.c.b16 %v272, %v271
    %v323 = vpack.c.b16 %v274, %v273
    %v324 = vpack.c.b16 %v276, %v275
    %v325 = vpack.c.b16 %v278, %v277
    %v326 = vpack.c.b16 %v280, %v279
    %v327 = vpack.c.b16 %v282, %v281
    %v328 = vpack.c.b16 %v284, %v283
    %v329 = vpack.c.b16 %v286, %v285
    %v330 = vpack.c.b16 %v288, %v287
    %v331 = vpack.c.b16 %v290, %v289
    %v332 = vpack.c.b16 %v292, %v291
    %373 = vmatprep.subr.bf16.mxu0 0
    %374 = vmatpush1.bf16.msra.mxu0 %v293
    %375 = vmatprep.subr.bf16.mxu0 0
    %376 = vmatpush1.bf16.msra.mxu0 %v294
    %377 = vmatprep.subr.bf16.mxu0 0
    %378 = vmatpush1.bf16.msra.mxu0 %v295
    %379 = vmatprep.subr.bf16.mxu0 0
    %380 = vmatpush1.bf16.msra.mxu0 %v296
    %381 = vmatprep.subr.bf16.mxu0 0
    %382 = vmatpush1.bf16.msra.mxu0 %v297
    %383 = vmatprep.subr.bf16.mxu0 0
    %384 = vmatpush1.bf16.msra.mxu0 %v298
    %385 = vmatprep.subr.bf16.mxu0 0
    %386 = vmatpush1.bf16.msra.mxu0 %v299
    %387 = vmatprep.subr.bf16.mxu0 0
    %388 = vmatpush1.bf16.msra.mxu0 %v300
    %389 = vmatprep.subr.bf16.mxu0 0
    %390 = vmatpush1.bf16.msra.mxu0 %v301
    %391 = vmatprep.subr.bf16.mxu0 0
    %392 = vmatpush1.bf16.msra.mxu0 %v302
    %393 = vmatprep.subr.bf16.mxu0 0
    %394 = vmatpush1.bf16.msra.mxu0 %v303
    %395 = vmatprep.subr.bf16.mxu0 0
    %396 = vmatpush1.bf16.msra.mxu0 %v304
    %397 = vmatprep.subr.bf16.mxu0 0
    %398 = vmatpush1.bf16.msra.mxu0 %v305
    %399 = vmatprep.subr.bf16.mxu0 0
    %400 = vmatpush1.bf16.msra.mxu0 %v306
    %401 = vmatprep.subr.bf16.mxu0 0
    %402 = vmatpush1.bf16.msra.mxu0 %v307
    %403 = vmatprep.subr.bf16.mxu0 0
    %404 = vmatpush1.bf16.msra.mxu0 %v308
    %405 = vmatprep.mubr.bf16.mxu0 %v124
    %406 = vmatmul.mubr.bf16.gmra.mrb[0].mxu0 %v123
    %v407 = vpop.f32.mrb[0].mxu0
    %v408 = vadd.f32 0.0, %v407
    %v409 = vpop.f32.mrb[0].mxu0
    %v410 = vpop.f32.mrb[0].mxu0
    %v411 = vadd.f32 0.0, %v410
    %v412 = vpop.f32.mrb[0].mxu0
    %413 = vdwg.mxu0
    %414 = vmatprep.subr.bf16.mxu0 0
    %415 = vmatpush1.bf16.msra.mxu0 %v309
    %416 = vmatprep.subr.bf16.mxu0 0
    %417 = vmatpush1.bf16.msra.mxu0 %v310
    %418 = vmatprep.subr.bf16.mxu0 0
    %419 = vmatpush1.bf16.msra.mxu0 %v311
    %420 = vmatprep.subr.bf16.mxu0 0
    %421 = vmatpush1.bf16.msra.mxu0 %v312
    %422 = vmatprep.subr.bf16.mxu0 0
    %423 = vmatpush1.bf16.msra.mxu0 %v313
    %424 = vmatprep.subr.bf16.mxu0 0
    %425 = vmatpush1.bf16.msra.mxu0 %v314
    %426 = vmatprep.subr.bf16.mxu0 0
    %427 = vmatpush1.bf16.msra.mxu0 %v315
    %428 = vmatprep.subr.bf16.mxu0 0
    %429 = vmatpush1.bf16.msra.mxu0 %v316
    %430 = vmatprep.subr.bf16.mxu0 0
    %431 = vmatpush1.bf16.msra.mxu0 %v317
    %432 = vmatprep.subr.bf16.mxu0 0
    %433 = vmatpush1.bf16.msra.mxu0 %v318
    %434 = vmatprep.subr.bf16.mxu0 0
    %435 = vmatpush1.bf16.msra.mxu0 %v319
    %436 = vmatprep.subr.bf16.mxu0 0
    %437 = vmatpush1.bf16.msra.mxu0 %v320
    %438 = vmatprep.subr.bf16.mxu0 0
    %439 = vmatpush1.bf16.msra.mxu0 %v321
    %440 = vmatprep.subr.bf16.mxu0 0
    %441 = vmatpush1.bf16.msra.mxu0 %v322
    %442 = vmatprep.subr.bf16.mxu0 0
    %443 = vmatpush1.bf16.msra.mxu0 %v323
    %444 = vmatprep.subr.bf16.mxu0 0
    %445 = vmatpush1.bf16.msra.mxu0 %v324
    %446 = vmatprep.mubr.bf16.mxu0 %v126
    %447 = vmatmul.mubr.bf16.gmra.mrb[0].mxu0 %v125
    %v448 = vpop.f32.mrb[0].mxu0
    %v449 = vadd.f32 %v408, %v448
    %v450 = vpop.f32.mrb[0].mxu0
    %v451 = vpop.f32.mrb[0].mxu0
    %v452 = vadd.f32 %v411, %v451
    %v453 = vpop.f32.mrb[0].mxu0
    %454 = vdwg.mxu0
    %455 = vmatprep.subr.bf16.mxu0 0
    %456 = vmatpush1.bf16.msra.mxu0 %v325
    %457 = vmatprep.subr.bf16.mxu0 0
    %458 = vmatpush1.bf16.msra.mxu0 %v326
    %459 = vmatprep.subr.bf16.mxu0 0
    %460 = vmatpush1.bf16.msra.mxu0 %v327
    %461 = vmatprep.subr.bf16.mxu0 0
    %462 = vmatpush1.bf16.msra.mxu0 %v328
    %463 = vmatprep.subr.bf16.mxu0 0
    %464 = vmatpush1.bf16.msra.mxu0 %v329
    %465 = vmatprep.subr.bf16.mxu0 0
    %466 = vmatpush1.bf16.msra.mxu0 %v330
    %467 = vmatprep.subr.bf16.mxu0 0
    %468 = vmatpush1.bf16.msra.mxu0 %v331
    %469 = vmatprep.subr.bf16.mxu0 0
    %470 = vmatpush1.bf16.msra.mxu0 %v332
    %471 = vmatprep.subr.bf16.mxu0 0
    %472 = vmatpush1.bf16.msra.mxu0 0
    %473 = vmatprep.subr.bf16.mxu0 0
    %474 = vmatpush1.bf16.msra.mxu0 0
    %475 = vmatprep.subr.bf16.mxu0 0
    %476 = vmatpush1.bf16.msra.mxu0 0
    %477 = vmatprep.subr.bf16.mxu0 0
    %478 = vmatpush1.bf16.msra.mxu0 0
    %479 = vmatprep.subr.bf16.mxu0 0
    %480 = vmatpush1.bf16.msra.mxu0 0
    %481 = vmatprep.subr.bf16.mxu0 0
    %482 = vmatpush1.bf16.msra.mxu0 0
    %483 = vmatprep.subr.bf16.mxu0 0
    %484 = vmatpush1.bf16.msra.mxu0 0
    %485 = vmatprep.subr.bf16.mxu0 0
    %486 = vmatpush1.bf16.msra.mxu0 0
    %487 = vmatprep.mubr.bf16.mxu0 0
    %488 = vmatmul.mubr.bf16.gmra.mrb[0].mxu0 %v127
    %v489 = vpop.f32.mrb[0].mxu0
    %v490 = vadd.f32 %v449, %v489
    %v491 = vpop.f32.mrb[0].mxu0
    %v492 = vpop.f32.mrb[0].mxu0
    %v493 = vadd.f32 %v452, %v492
    %v494 = vpop.f32.mrb[0].mxu0
    %495 = vdwg.mxu0
    %v496 = vadd.f32 %v19, %v490
    %v497 = vadd.f32 %v20, %v493
    %498 = vst [vmem:[#allocation2] sm:$0xff] %v496
    %499 = vst [vmem:[#allocation2 + $0x8] sm:$0xff] %v497
    // Predicated region
    $region14: #{sketch_apply.1} parent=1 // pred_check
      _
    $region15: #{sketch_apply.1} parent=1 // pred_check_branch
      %501 = sbr.rel (0) target = $region17
    $region16: #{sketch_apply.1} parent=1 // pred_region
      %s503 = ssub.s32 256, 256
      %504 = vsyncadd [#allocation3], %s503
      %s505 = sshll.u32 [#allocation2], 4
      %s506 = int_to_ptr.vmem [resolvable:$true] %s505
      %511 = dma.vmem_to_hbm [thread:$0]  %s506, 256, %s2, [#allocation3], 128, 128, 8
    $region17: #{sketch_apply.1} parent=1 // pred_fallthru
      _
    // Predicated region
    $region18: #{sketch_apply.1} parent=1 // pred_check
      _
    $region19: #{sketch_apply.1} parent=1 // pred_check_branch
      %513 = sbr.rel (0) target = $region21
    $region20: #{sketch_apply.1} parent=1 // pred_region
      %514 = dma.done [#allocation3], 256
    $region21: #{sketch_apply.1} parent=1 // pred_fallthru
      _
    %515 = vsyncpa [#allocation3], 1

</llo_original>
